<compile_context>
chip_gen: v7x
topology: tpu7x:2x2x1
jax: 0.10.0
libtpu: 0.0.40
codegen_flags: <defaults>
</compile_context>

<pallas_src>
import functools
import numpy as np
import jax
import jax.numpy as jnp
from jax.experimental import pallas as pl
from jax.experimental.pallas import tpu as pltpu

NUM_POINTS = 4  # PointsPredictor default


def corner_head_kernel(x_ref, wT_ref, b_ref, boxes_ref, out_ref, *, num_points):
    # Linear: deltas = x @ W^T + b   (f32 throughout; compute slack is huge)
    deltas = jnp.dot(x_ref[...], wT_ref[...],
                     preferred_element_type=jnp.float32)           # (TM, 2P)
    deltas = deltas + b_ref[...]                                    # (1, 2P) broadcast
    # torch.clamp(corner_deltas, -2.0, 2.0)
    deltas = jnp.clip(deltas, -2.0, 2.0)

    # Geometry from raw XYXY boxes: 16 B/row of HBM instead of 64 B/row of
    # pre-tiled centers/sizes. Cheap VPU lane work hidden under the x DMA.
    boxes = boxes_ref[...]                                          # (TM, 4)
    xy0 = boxes[:, 0:2]                                             # (TM, 2)
    xy1 = boxes[:, 2:4]                                             # (TM, 2)
    sizes = xy1 - xy0                                               # (w, h)
    centers = (xy0 + xy1) * 0.5                                     # (cx, cy)
    # Repeat (w,h)/(cx,cy) P times along lanes == deltas.view(-1,P,2) layout.
    sizes_t = jnp.concatenate([sizes] * num_points, axis=-1)        # (TM, 2P)
    centers_t = jnp.concatenate([centers] * num_points, axis=-1)    # (TM, 2P)

    out_ref[...] = centers_t + deltas * sizes_t


def _cdiv(a, b):
    return -(-a // b)


def _round_up(a, b):
    return ((a + b - 1) // b) * b


def _vmem_capacity_bytes():
    try:
        return int(pltpu.get_tpu_info().vmem_capacity_bytes)
    except Exception:
        return 64 * 1024 * 1024  # conservative (v7x-class) fallback


def _pick_tile_m(n, row_bytes, x_tile_budget):
    """Rows per grid step: multiple of 8, VMEM-budgeted, >=2 steps when N > 8."""
    if n <= 8:
        return max(n, 1)                                        # single full block
    tm_vmem = max(8, (x_tile_budget // max(1, row_bytes)) // 8 * 8)   # VMEM bound
    tm_split = max(8, _round_up(_cdiv(n, 2), 8))                # >= 2 steps (v7x megacore)
    tm_bytes = max(8, _round_up(_cdiv(4 * 1024 * 1024, max(1, row_bytes)), 8))  # ~4 MiB/step
    tm_steps = max(8, _round_up(_cdiv(n, 8), 8))                # keep >= ~8 steps when big
    return min(tm_vmem, tm_split, max(tm_bytes, tm_steps))


def corner_head_forward(x, weight, bias, proposal_boxes, num_points=NUM_POINTS):
    """Inference branch of CornerHead.forward for the concatenated proposals.

    x:              (N, C, H, W) float32 pooled ROI features
    weight:         (2*num_points, C*H*W) float32 (Linear weight, PyTorch layout)
    bias:           (2*num_points,) float32
    proposal_boxes: (N, 4) float32, XYXY
    returns:        (N, num_points, 2) predicted corners in image coords
    """
    n = int(x.shape[0])
    d = int(np.prod(x.shape[1:]))
    p2 = 2 * num_points

    # ---- wrapper-side prep (no extra pass over x: reshape is a free bitcast) ----
    x_flat = x.reshape(n, d)                                    # (N, D), native dtype
    wT = jnp.asarray(weight, jnp.float32).T                     # (D, 2P), tiny
    b = jnp.asarray(bias, jnp.float32).reshape(1, p2)           # (1, 2P)
    boxes = jnp.asarray(proposal_boxes, jnp.float32)            # (N, 4), XYXY

    # ---- generation-aware VMEM budgets ----
    vmem_cap = _vmem_capacity_bytes()
    if vmem_cap <= 64 * 1024 * 1024:          # v7x-class: 64 MiB physical VMEM
        x_tile_budget = 8 * 1024 * 1024
        vmem_limit_cap = 30 * 1024 * 1024
    else:                                      # v5e / v6e: 128 MiB physical VMEM
        x_tile_budget = 24 * 1024 * 1024
        vmem_limit_cap = 64 * 1024 * 1024

    row_bytes = d * jnp.dtype(x_flat.dtype).itemsize
    tm = _pick_tile_m(n, row_bytes, x_tile_budget)

    # Honest VMEM accounting (double buffers counted once, no 2x inflation).
    def _tiles_bytes(tm_):
        return (2 * tm_ * row_bytes              # x tile (double-buffered)
                + 2 * d * p2 * 4 + 2 * p2 * 4    # W^T + bias (constant index_map)
                + 2 * tm_ * 4 * 4                # boxes tile
                + 2 * tm_ * p2 * 4)              # out tile

    # Defensive shrink if the resident W^T plus buffers would not fit the cap.
    while tm > 8 and _tiles_bytes(tm) > vmem_limit_cap - 4 * 1024 * 1024:
        tm = max(8, (tm // 2) // 8 * 8)
    # TODO(synk): for very large D where even a (8, D) f32 tile + W^T exceeds
    # VMEM, add a trailing "arbitrary" K axis with an f32 accumulator.

    grid = (_cdiv(n, tm),)   # ragged last block is masked by Pallas; no jnp.pad of x
    tile_bytes = _tiles_bytes(tm)
    vmem_limit = int(min(vmem_limit_cap,
                         max(tile_bytes + 4 * 1024 * 1024, 16 * 1024 * 1024)))

    cost = pl.CostEstimate(
        flops=2 * n * d * p2 + 8 * n * p2,
        transcendentals=0,
        bytes_accessed=(n * row_bytes             # x
                        + d * p2 * 4 + p2 * 4     # W^T, bias
                        + n * 4 * 4               # boxes
                        + n * p2 * 4),            # out
    )

    kernel = functools.partial(corner_head_kernel, num_points=num_points)
    out = pl.pallas_call(
        kernel,
        out_shape=jax.ShapeDtypeStruct((n, p2), jnp.float32),
        grid_spec=pltpu.PrefetchScalarGridSpec(
            num_scalar_prefetch=0,
            grid=grid,
            in_specs=[
                pl.BlockSpec((tm, d), lambda i: (i, 0)),    # x tile (streamed)
                pl.BlockSpec((d, p2), lambda i: (0, 0)),    # W^T (resident)
                pl.BlockSpec((1, p2), lambda i: (0, 0)),    # bias (resident)
                pl.BlockSpec((tm, 4), lambda i: (i, 0)),    # raw XYXY boxes tile
            ],
            out_specs=pl.BlockSpec((tm, p2), lambda i: (i, 0)),
        ),
        compiler_params=pltpu.CompilerParams(
            dimension_semantics=("parallel",),   # shards N across v7x's 2 TCs
            vmem_limit_bytes=vmem_limit,
        ),
        cost_estimate=cost,
    )(x_flat, wT, b, boxes)

    return out.reshape(n, num_points, 2)


def corner_head_reference(x, weight, bias, proposal_boxes, num_points=NUM_POINTS):
    """Plain-JAX (f32) reference mirroring the PyTorch code (eval mode)."""
    n = x.shape[0]
    x_flat = x.reshape(n, -1)
    deltas = (x_flat @ weight.T + bias).reshape(-1, num_points, 2)
    deltas = jnp.clip(deltas, -2.0, 2.0)
    sizes = proposal_boxes[:, 2:] - proposal_boxes[:, :2]
    centers = (proposal_boxes[:, :2] + proposal_boxes[:, 2:]) * 0.5
    return centers[:, None, :] + deltas * sizes[:, None, :]


if __name__ == "__main__":
    # Small shapes consistent with the module: ROI features of 4 channels, 8x8
    # pooled spatial extent, 16 total proposals across 2 "images".
    N_PER_IMAGE = [8, 8]
    N = sum(N_PER_IMAGE)
    C, H, W = 4, 8, 8
    D = C * H * W

    key = jax.random.PRNGKey(0)
    kx, kw, kb0, kwh = jax.random.split(key, 4)

    x = jax.random.normal(kx, (N, C, H, W), dtype=jnp.float32)

    # PointsPredictor params: weight ~ N(0, std=0.0002), bias = 0.
    weight = 0.0002 * jax.random.normal(kw, (2 * NUM_POINTS, D), dtype=jnp.float32)
    bias = jnp.zeros((2 * NUM_POINTS,), dtype=jnp.float32)

    # Deterministic valid XYXY proposal boxes (x1 > x0, y1 > y0).
    xy0 = 100.0 * jax.random.uniform(kb0, (N, 2), dtype=jnp.float32)
    wh = 5.0 + 50.0 * jax.random.uniform(kwh, (N, 2), dtype=jnp.float32)
    proposal_boxes = jnp.concatenate([xy0, xy0 + wh], axis=1)  # (N, 4)

    corners = corner_head_forward(x, weight, bias, proposal_boxes)
    corners = jax.block_until_ready(corners)

    # Check against the plain-JAX f32 reference.
    ref = corner_head_reference(x, weight, bias, proposal_boxes)
    assert corners.shape == (N, NUM_POINTS, 2)
    assert jnp.allclose(corners, ref, atol=1e-3, rtol=1e-4), (
        float(jnp.max(jnp.abs(corners - ref))))

    # Re-split corners per image, as CornerHead returns a list of batches.
    corner_batches, i = [], 0
    for data_len in N_PER_IMAGE:
        corner_batches.append(corners[i:i + data_len])
        i += data_len
    assert len(corner_batches) == 2 and corner_batches[0].shape == (8, NUM_POINTS, 2)

    # TODO(synk): training branch (AdaptiveLoss l1 over fg-selected gt_corners)
    # is not implemented; only the inference corner-decoding path is kernelized.
    print("KERNEL_OK")
</pallas_src>

<mosaic_0001>
module attributes {stable_mosaic.version = 11 : i64} {
  func.func @corner_head_kernel(%arg0: i32, %arg1: memref<8x256xf32, #tpu.memory_space<vmem>>, %arg2: memref<256x8xf32, #tpu.memory_space<vmem>>, %arg3: memref<1x8xf32, #tpu.memory_space<vmem>>, %arg4: memref<8x4xf32, #tpu.memory_space<vmem>>, %arg5: memref<8x8xf32, #tpu.memory_space<vmem>>) attributes {dimension_semantics = [#tpu.dimension_semantics<parallel>], iteration_bounds = array<i64: 2>, scalar_prefetch = 0 : i64, scratch_operands = 0 : i64, tpu.core_type = #tpu.core_type<tc>, window_params = [{transform_indices = @transform_0, window_bounds = array<i64: 8, 256>}, {pipeline_mode = #tpu.pipeline_mode<synchronous>, transform_indices = @transform_1, window_bounds = array<i64: 256, 8>}, {pipeline_mode = #tpu.pipeline_mode<synchronous>, transform_indices = @transform_2, window_bounds = array<i64: 1, 8>}, {transform_indices = @transform_3, window_bounds = array<i64: 8, 4>}, {transform_indices = @transform_4, window_bounds = array<i64: 8, 8>}]} {
    %c0 = arith.constant 0 : index
    %c0_0 = arith.constant 0 : index
    %0 = vector.load %arg1[%c0, %c0_0] : memref<8x256xf32, #tpu.memory_space<vmem>>, vector<8x256xf32>
    %c0_1 = arith.constant 0 : index
    %c0_2 = arith.constant 0 : index
    %1 = vector.load %arg2[%c0_1, %c0_2] : memref<256x8xf32, #tpu.memory_space<vmem>>, vector<256x8xf32>
    %cst = arith.constant dense<0.000000e+00> : vector<8x8xf32>
    %2 = tpu.matmul %0, %1, %cst {dimension_numbers = #tpu.dot_dimension_numbers<[1], [0], [0], [1], [0, 0, 1, 1], [], []>} : vector<8x256xf32>, vector<256x8xf32>, vector<8x8xf32> -> vector<8x8xf32>
    %c0_3 = arith.constant 0 : index
    %c0_4 = arith.constant 0 : index
    %3 = vector.load %arg3[%c0_3, %c0_4] : memref<1x8xf32, #tpu.memory_space<vmem>>, vector<1x8xf32>
    %4 = vector.broadcast %3 : vector<1x8xf32> to vector<8x8xf32>
    %5 = arith.addf %2, %4 : vector<8x8xf32>
    %cst_5 = arith.constant -2.000000e+00 : f32
    %cst_6 = arith.constant 2.000000e+00 : f32
    %6 = vector.broadcast %cst_5 : f32 to vector<8x8xf32>
    %7 = arith.maximumf %6, %5 : vector<8x8xf32>
    %8 = vector.broadcast %cst_6 : f32 to vector<8x8xf32>
    %9 = arith.minimumf %8, %7 : vector<8x8xf32>
    %c0_7 = arith.constant 0 : index
    %c0_8 = arith.constant 0 : index
    %10 = vector.load %arg4[%c0_7, %c0_8] : memref<8x4xf32, #tpu.memory_space<vmem>>, vector<8x4xf32>
    %11 = vector.extract_strided_slice %10 {offsets = [0, 0], sizes = [8, 2], strides = [1, 1]} : vector<8x4xf32> to vector<8x2xf32>
    %12 = vector.extract_strided_slice %10 {offsets = [0, 2], sizes = [8, 2], strides = [1, 1]} : vector<8x4xf32> to vector<8x2xf32>
    %13 = arith.subf %12, %11 : vector<8x2xf32>
    %14 = arith.addf %11, %12 : vector<8x2xf32>
    %cst_9 = arith.constant 5.000000e-01 : f32
    %15 = vector.broadcast %cst_9 : f32 to vector<8x2xf32>
    %16 = arith.mulf %14, %15 : vector<8x2xf32>
    %17 = tpu.concatenate %13, %13, %13, %13 in 1 : vector<8x2xf32>, vector<8x2xf32>, vector<8x2xf32>, vector<8x2xf32> -> vector<8x8xf32>
    %18 = tpu.concatenate %16, %16, %16, %16 in 1 : vector<8x2xf32>, vector<8x2xf32>, vector<8x2xf32>, vector<8x2xf32> -> vector<8x8xf32>
    %19 = arith.mulf %9, %17 : vector<8x8xf32>
    %20 = arith.addf %18, %19 : vector<8x8xf32>
    %c0_10 = arith.constant 0 : index
    %c0_11 = arith.constant 0 : index
    %21 = vector.load %arg5[%c0_10, %c0_11] : memref<8x8xf32, #tpu.memory_space<vmem>>, vector<8x8xf32>
    tpu.vector_store %arg5[%c0_10, %c0_11], %20 {strides = array<i32>} : memref<8x8xf32, #tpu.memory_space<vmem>>, vector<8x8xf32>,
    return
  }
  func.func @transform_0(%arg0: i32) -> (i32, i32) {
    %c0_i32 = arith.constant 0 : i32
    %c0_i32_0 = arith.constant 0 : i32
    return %arg0, %c0_i32 : i32, i32
  }
  func.func @transform_1(%arg0: i32) -> (i32, i32) {
    %c0_i32 = arith.constant 0 : i32
    %c0_i32_0 = arith.constant 0 : i32
    %c0_i32_1 = arith.constant 0 : i32
    return %c0_i32, %c0_i32_0 : i32, i32
  }
  func.func @transform_2(%arg0: i32) -> (i32, i32) {
    %c0_i32 = arith.constant 0 : i32
    %c0_i32_0 = arith.constant 0 : i32
    %c0_i32_1 = arith.constant 0 : i32
    return %c0_i32, %c0_i32_0 : i32, i32
  }
  func.func @transform_3(%arg0: i32) -> (i32, i32) {
    %c0_i32 = arith.constant 0 : i32
    %c0_i32_0 = arith.constant 0 : i32
    return %arg0, %c0_i32 : i32, i32
  }
  func.func @transform_4(%arg0: i32) -> (i32, i32) {
    %c0_i32 = arith.constant 0 : i32
    %c0_i32_0 = arith.constant 0 : i32
    return %arg0, %c0_i32 : i32, i32
  }
}

</mosaic_0001>

<llo_original>
// kernel: tpu_custom_call.1
$region0: #{tpu_custom_call.1}
  #allocation0 [shape = 'u32[]', space=smem, size = 0x4, offset = 0x4, fixed_abs, tag = 'smem constant byte address 0x4 - core index']
  #allocation1 [shape = 'u32[144,128]{1,0:T(1,128)}', space=vmem, size = 0x12000, scoped, tag = 'internal scratch']
  %s0 = inlined_call_operand.vmem [shape: f32[16,256], index: 0, kind: input, shape index: {}]
  %s1 = inlined_call_operand.vmem [shape: f32[256,8], index: 1, kind: input, shape index: {}]
  %s2 = inlined_call_operand.vmem [shape: f32[1,8], index: 2, kind: input, shape index: {}]
  %s3 = inlined_call_operand.vmem [shape: f32[16,4], index: 3, kind: input, shape index: {}]
  %s4 = inlined_call_operand.vmem [shape: f32[16,8], index: 4, kind: output, shape index: {}]
  %s5 = sld [smem:[#allocation0]]
  $region49: #{tpu_custom_call.1} parent=0
    _
  %s7 = ssub.s32 1, %s5
  %s8 = scalar_select 0, %s7, %s5
  loop: start=0, step=1, limit=4
  $region2: #{tpu_custom_call.1} parent=0 // loop_pre_header
    _
  $region3: #{tpu_custom_call.1} parent=0 // loop_header
    %s10 = sphi 0, %s14
    %p11 = scmp.ge.s32.totalorder %s10, 4
    %s20 = sphi 0, %s22
    %s23 = sphi 0, %s20
    %s24 = sphi 0, %s23
    %s40 = sphi 0, %s24
    %s44 = sphi 0, %s44
    %s46 = sphi 0, %s44
    %s47 = sphi 0, %s46
    %s61 = sphi 0, %s47
    %s65 = sphi 0, %s65
    %s67 = sphi 0, %s65
    %s68 = sphi 0, %s67
    %s82 = sphi 0, %s68
    %s88 = sphi 0, %s90
    %s91 = sphi 0, %s88
    %s92 = sphi 0, %s91
    %s108 = sphi 0, %s92
    %s114 = sphi 0, %s116
    %s117 = sphi 0, %s114
    %s118 = sphi 0, %s117
    %s134 = sphi 0, %s118
  $region4: #{tpu_custom_call.1} parent=0 // loop_header_branch
    %13 = sbr.rel (%p11) target = $region8
  $region5: #{tpu_custom_call.1} parent=0 // loop_body
    %s15 = ssub.s32 %s10, 1
    %s16 = ssub.s32 %s10, 2
    %s17 = sadd.s32 %s10, 1
    %s18 = ssub.s32 %s10, %s17
    %p19 = scmp.eq.s32.totalorder %s18, 0
    %s21 = sadd.s32 %s20, 1
    %s22 = scalar_select %p19, %s20, %s21
    %p25 = pneg %p19
    %p26 = scmp.eq.s32.totalorder %s10, 1
    %p27 = por %p25, %p26
    %p28 = scmp.ne.s32.totalorder %s20, %s23
    %p29 = scmp.eq.s32.totalorder %s10, 0
    %p30 = por %p28, %p29
    %p31 = scmp.ne.s32.totalorder %s20, %s23
    %p32 = scmp.eq.s32.totalorder %s15, 1
    %p33 = por %p31, %p32
    %p34 = scmp.ne.s32.totalorder %s23, %s24
    %p35 = scmp.eq.s32.totalorder %s15, 0
    %p36 = por %p34, %p35
    %p37 = scmp.ne.s32.totalorder %s23, %s24
    %p38 = scmp.eq.s32.totalorder %s16, 1
    %p39 = por %p37, %p38
    %p41 = scmp.ne.s32.totalorder %s24, %s40
    %p42 = scmp.eq.s32.totalorder %s16, 0
    %p43 = por %p41, %p42
    %s45 = sadd.s32 %s44, 1
    %p48 = scmp.eq.s32.totalorder %s10, 1
    %p49 = scmp.ne.s32.totalorder %s44, %s46
    %p50 = scmp.eq.s32.totalorder %s10, 0
    %p51 = por %p49, %p50
    %p52 = scmp.ne.s32.totalorder %s44, %s46
    %p53 = scmp.eq.s32.totalorder %s15, 1
    %p54 = por %p52, %p53
    %p55 = scmp.ne.s32.totalorder %s46, %s47
    %p56 = scmp.eq.s32.totalorder %s15, 0
    %p57 = por %p55, %p56
    %p58 = scmp.ne.s32.totalorder %s46, %s47
    %p59 = scmp.eq.s32.totalorder %s16, 1
    %p60 = por %p58, %p59
    %p62 = scmp.ne.s32.totalorder %s47, %s61
    %p63 = scmp.eq.s32.totalorder %s16, 0
    %p64 = por %p62, %p63
    %s66 = sadd.s32 %s65, 1
    %p69 = scmp.eq.s32.totalorder %s10, 1
    %p70 = scmp.ne.s32.totalorder %s65, %s67
    %p71 = scmp.eq.s32.totalorder %s10, 0
    %p72 = por %p70, %p71
    %p73 = scmp.ne.s32.totalorder %s65, %s67
    %p74 = scmp.eq.s32.totalorder %s15, 1
    %p75 = por %p73, %p74
    %p76 = scmp.ne.s32.totalorder %s67, %s68
    %p77 = scmp.eq.s32.totalorder %s15, 0
    %p78 = por %p76, %p77
    %p79 = scmp.ne.s32.totalorder %s67, %s68
    %p80 = scmp.eq.s32.totalorder %s16, 1
    %p81 = por %p79, %p80
    %p83 = scmp.ne.s32.totalorder %s68, %s82
    %p84 = scmp.eq.s32.totalorder %s16, 0
    %p85 = por %p83, %p84
    %s86 = ssub.s32 %s10, %s17
    %p87 = scmp.eq.s32.totalorder %s86, 0
    %s89 = sadd.s32 %s88, 1
    %s90 = scalar_select %p87, %s88, %s89
    %p93 = pneg %p87
    %p94 = scmp.eq.s32.totalorder %s10, 1
    %p95 = por %p93, %p94
    %p96 = scmp.ne.s32.totalorder %s88, %s91
    %p97 = scmp.eq.s32.totalorder %s10, 0
    %p98 = por %p96, %p97
    %p99 = scmp.ne.s32.totalorder %s88, %s91
    %p100 = scmp.eq.s32.totalorder %s15, 1
    %p101 = por %p99, %p100
    %p102 = scmp.ne.s32.totalorder %s91, %s92
    %p103 = scmp.eq.s32.totalorder %s15, 0
    %p104 = por %p102, %p103
    %p105 = scmp.ne.s32.totalorder %s91, %s92
    %p106 = scmp.eq.s32.totalorder %s16, 1
    %p107 = por %p105, %p106
    %p109 = scmp.ne.s32.totalorder %s92, %s108
    %p110 = scmp.eq.s32.totalorder %s16, 0
    %p111 = por %p109, %p110
    %s112 = ssub.s32 %s10, %s17
    %p113 = scmp.eq.s32.totalorder %s112, 0
    %s115 = sadd.s32 %s114, 1
    %s116 = scalar_select %p113, %s114, %s115
    %p119 = pneg %p113
    %p120 = scmp.eq.s32.totalorder %s10, 1
    %p121 = por %p119, %p120
    %p122 = scmp.ne.s32.totalorder %s114, %s117
    %p123 = scmp.eq.s32.totalorder %s10, 0
    %p124 = por %p122, %p123
    %p125 = scmp.ne.s32.totalorder %s114, %s117
    %p126 = scmp.eq.s32.totalorder %s15, 1
    %p127 = por %p125, %p126
    %p128 = scmp.ne.s32.totalorder %s117, %s118
    %p129 = scmp.eq.s32.totalorder %s15, 0
    %p130 = por %p128, %p129
    %p131 = scmp.ne.s32.totalorder %s117, %s118
    %p132 = scmp.eq.s32.totalorder %s16, 1
    %p133 = por %p131, %p132
    %p135 = scmp.ne.s32.totalorder %s118, %s134
    %p136 = scmp.eq.s32.totalorder %s16, 0
    %p137 = por %p135, %p136
    %p138 = scmp.le.s32.totalorder 1, %s10
    %p139 = scmp.lt.s32.totalorder %s10, 3
    %p140 = pnand %p138, %p139
    %p141 = pneg %p140
    // Predicated region
    $region9: #{tpu_custom_call.1} parent=5 // pred_check
      _
    $region10: #{tpu_custom_call.1} parent=5 // pred_check_branch
      %143 = sbr.rel (%p140) target = $region12
    $region11: #{tpu_custom_call.1} parent=5 // pred_region
      %s144 = ssub.s32 %s10, 1
      // Predicated region
      $region13: #{tpu_custom_call.1} parent=11 // pred_check
        %p145 = pneg %p57
      $region14: #{tpu_custom_call.1} parent=11 // pred_check_branch
        %147 = sbr.rel (%p145) target = $region16
      $region15: #{tpu_custom_call.1} parent=11 // pred_region
        _
      $region16: #{tpu_custom_call.1} parent=11 // pred_fallthru
        _
      // Predicated region
      $region17: #{tpu_custom_call.1} parent=11 // pred_check
        %p148 = pneg %p78
      $region18: #{tpu_custom_call.1} parent=11 // pred_check_branch
        %150 = sbr.rel (%p148) target = $region20
      $region19: #{tpu_custom_call.1} parent=11 // pred_region
        _
      $region20: #{tpu_custom_call.1} parent=11 // pred_fallthru
        _
    $region12: #{tpu_custom_call.1} parent=5 // pred_fallthru
      _
    %p151 = scmp.lt.s32.totalorder %s10, 2
    // Predicated region
    $region21: #{tpu_custom_call.1} parent=5 // pred_check
      %p152 = pneg %p151
    $region22: #{tpu_custom_call.1} parent=5 // pred_check_branch
      %154 = sbr.rel (%p152) target = $region24
    $region23: #{tpu_custom_call.1} parent=5 // pred_region
      // Predicated region
      $region25: #{tpu_custom_call.1} parent=23 // pred_check
        %p155 = pneg %p30
      $region26: #{tpu_custom_call.1} parent=23 // pred_check_branch
        %157 = sbr.rel (%p155) target = $region28
      $region27: #{tpu_custom_call.1} parent=23 // pred_region
        %p158 = scmp.lt.s32.totalorder %s10, 1
        %s159 = scalar_select %p158, %s10, 1
        %s160 = smul.addr %s159, 2
        %s161 = smul.addr %s160, 8
        %s162 = scalar_lea.vmem %s0, %s161
      $region28: #{tpu_custom_call.1} parent=23 // pred_fallthru
        _
      // Predicated region
      $region29: #{tpu_custom_call.1} parent=23 // pred_check
        %p163 = pneg %p98
      $region30: #{tpu_custom_call.1} parent=23 // pred_check_branch
        %165 = sbr.rel (%p163) target = $region32
      $region31: #{tpu_custom_call.1} parent=23 // pred_region
        %p166 = scmp.lt.s32.totalorder %s10, 1
        %s167 = scalar_select %p166, %s10, 1
        %s168 = smul.addr %s167, 8
        %s169 = scalar_lea.vmem %s3, %s168
      $region32: #{tpu_custom_call.1} parent=23 // pred_fallthru
        _
    $region24: #{tpu_custom_call.1} parent=5 // pred_fallthru
      _
    %p170 = scmp.le.s32.totalorder 1, %s10
    %p171 = scmp.lt.s32.totalorder %s10, 3
    %p172 = pnand %p170, %p171
    %p173 = pneg %p172
    // Predicated region
    $region33: #{tpu_custom_call.1} parent=5 // pred_check
      _
    $region34: #{tpu_custom_call.1} parent=5 // pred_check_branch
      %175 = sbr.rel (%p172) target = $region36
    $region35: #{tpu_custom_call.1} parent=5 // pred_region
      %s176 = ssub.s32 %s10, 1
      %p177 = scmp.lt.s32.totalorder %s15, 1
      %s178 = scalar_select %p177, %s15, 1
      %s179 = smul.addr %s178, 2
      %s180 = smul.addr %s179, 8
      %s181 = scalar_lea.vmem %s0, %s180
      %p182 = pneg %p36
      %p183 = pneg %p33
      %p184 = pneg %p57
      %p185 = pneg %p54
      %p186 = pneg %p78
      %p187 = pneg %p75
      %p188 = scmp.lt.s32.totalorder %s15, 1
      %s189 = scalar_select %p188, %s15, 1
      %s190 = smul.addr %s189, 8
      %s191 = scalar_lea.vmem %s3, %s190
      %p192 = pneg %p104
      %p193 = pneg %p101
      %p194 = pneg %p130
      %p195 = pneg %p127
      %p196 = scmp.lt.s32.totalorder %s15, 1
      %s197 = scalar_select %p196, %s15, 1
      %s198 = smul.addr %s197, 8
      %s199 = scalar_lea.vmem %s4, %s198
      %p200 = scmp.lt.s32.totalorder %s15, 1
      %s201 = scalar_select %p200, %s15, 1
      %s202 = smul.addr %s201, 2
      %s203 = smul.addr %s202, 8
      %s204 = scalar_lea.vmem %s0, %s203
      %p205 = scmp.lt.s32.totalorder %s15, 1
      %s206 = scalar_select %p205, %s15, 1
      %s207 = smul.addr %s206, 8
      %s208 = scalar_lea.vmem %s3, %s207
      %p209 = scmp.lt.s32.totalorder %s15, 1
      %s210 = scalar_select %p209, %s15, 1
      %s211 = smul.addr %s210, 8
      %s212 = scalar_lea.vmem %s4, %s211
      %v213 = vld [vmem:[%s204] sm:$0xff]
      %v214 = vld [vmem:[%s204 + $0x8] sm:$0xff]
      %v215 = vld [vmem:[%s1] sm:$0xff]
      %v216 = vld [vmem:[%s1 + $0x8] sm:$0xff]
      %v217 = vld [vmem:[%s1 + $0x10] sm:$0xff]
      %v218 = vld [vmem:[%s1 + $0x18] sm:$0xff]
      %v219 = vld [vmem:[%s1 + $0x20] sm:$0xff]
      %v220 = vld [vmem:[%s1 + $0x28] sm:$0xff]
      %v221 = vld [vmem:[%s1 + $0x30] sm:$0xff]
      %v222 = vld [vmem:[%s1 + $0x38] sm:$0xff]
      %v223 = vld [vmem:[%s1 + $0x40] sm:$0xff]
      %v224 = vld [vmem:[%s1 + $0x48] sm:$0xff]
      %v225 = vld [vmem:[%s1 + $0x50] sm:$0xff]
      %v226 = vld [vmem:[%s1 + $0x58] sm:$0xff]
      %v227 = vld [vmem:[%s1 + $0x60] sm:$0xff]
      %v228 = vld [vmem:[%s1 + $0x68] sm:$0xff]
      %v229 = vld [vmem:[%s1 + $0x70] sm:$0xff]
      %v230 = vld [vmem:[%s1 + $0x78] sm:$0xff]
      %v231 = vld [vmem:[%s1 + $0x80] sm:$0xff]
      %v232 = vld [vmem:[%s1 + $0x88] sm:$0xff]
      %v233 = vld [vmem:[%s1 + $0x90] sm:$0xff]
      %v234 = vld [vmem:[%s1 + $0x98] sm:$0xff]
      %v235 = vld [vmem:[%s1 + $0xa0] sm:$0xff]
      %v236 = vld [vmem:[%s1 + $0xa8] sm:$0xff]
      %v237 = vld [vmem:[%s1 + $0xb0] sm:$0xff]
      %v238 = vld [vmem:[%s1 + $0xb8] sm:$0xff]
      %v239 = vld [vmem:[%s1 + $0xc0] sm:$0xff]
      %v240 = vld [vmem:[%s1 + $0xc8] sm:$0xff]
      %v241 = vld [vmem:[%s1 + $0xd0] sm:$0xff]
      %v242 = vld [vmem:[%s1 + $0xd8] sm:$0xff]
      %v243 = vld [vmem:[%s1 + $0xe0] sm:$0xff]
      %v244 = vld [vmem:[%s1 + $0xe8] sm:$0xff]
      %v245 = vld [vmem:[%s1 + $0xf0] sm:$0xff]
      %v246 = vld [vmem:[%s1 + $0xf8] sm:$0xff]
      %v247 = vld [vmem:[%s2] sm:$0x1]
      %v249 = vlaneseq
      %v250 = vshrl.u32 %v249, 7
      %v251 = vsub.s32 0, %v250
      %v252 = vrot.slane %v247, %v251
      %254 = vmatprep.subr.mxu0 0.0
      %255 = vmatpush1.msra.mxu0 %v215
      %256 = vmatprep.subr.mxu0 0.0
      %257 = vmatpush1.msra.mxu0 %v216
      %258 = vmatprep.subr.mxu0 0.0
      %259 = vmatpush1.msra.mxu0 %v217
      %260 = vmatprep.subr.mxu0 0.0
      %261 = vmatpush1.msra.mxu0 %v218
      %262 = vmatprep.subr.mxu0 0.0
      %263 = vmatpush1.msra.mxu0 %v219
      %264 = vmatprep.subr.mxu0 0.0
      %265 = vmatpush1.msra.mxu0 %v220
      %266 = vmatprep.subr.mxu0 0.0
      %267 = vmatpush1.msra.mxu0 %v221
      %268 = vmatprep.subr.mxu0 0.0
      %269 = vmatpush1.msra.mxu0 %v222
      %270 = vmatprep.subr.mxu0 0.0
      %271 = vmatpush1.msra.mxu0 %v223
      %272 = vmatprep.subr.mxu0 0.0
      %273 = vmatpush1.msra.mxu0 %v224
      %274 = vmatprep.subr.mxu0 0.0
      %275 = vmatpush1.msra.mxu0 %v225
      %276 = vmatprep.subr.mxu0 0.0
      %277 = vmatpush1.msra.mxu0 %v226
      %278 = vmatprep.subr.mxu0 0.0
      %279 = vmatpush1.msra.mxu0 %v227
      %280 = vmatprep.subr.mxu0 0.0
      %281 = vmatpush1.msra.mxu0 %v228
      %282 = vmatprep.subr.mxu0 0.0
      %283 = vmatpush1.msra.mxu0 %v229
      %284 = vmatprep.subr.mxu0 0.0
      %285 = vmatpush1.msra.mxu0 %v230
      %286 = vmatprep.subr.mxu0 0.0
      %287 = vmatpush1.msra.mxu0 %v231
      %288 = vmatprep.subr.mxu0 0.0
      %289 = vmatpush1.msra.mxu0 %v232
      %290 = vmatprep.subr.mxu0 0.0
      %291 = vmatpush1.msra.mxu0 %v233
      %292 = vmatprep.subr.mxu0 0.0
      %293 = vmatpush1.msra.mxu0 %v234
      %294 = vmatprep.subr.mxu0 0.0
      %295 = vmatpush1.msra.mxu0 %v235
      %296 = vmatprep.subr.mxu0 0.0
      %297 = vmatpush1.msra.mxu0 %v236
      %298 = vmatprep.subr.mxu0 0.0
      %299 = vmatpush1.msra.mxu0 %v237
      %300 = vmatprep.subr.mxu0 0.0
      %301 = vmatpush1.msra.mxu0 %v238
      %302 = vmatprep.subr.mxu0 0.0
      %303 = vmatpush1.msra.mxu0 %v239
      %304 = vmatprep.subr.mxu0 0.0
      %305 = vmatpush1.msra.mxu0 %v240
      %306 = vmatprep.subr.mxu0 0.0
      %307 = vmatpush1.msra.mxu0 %v241
      %308 = vmatprep.subr.mxu0 0.0
      %309 = vmatpush1.msra.mxu0 %v242
      %310 = vmatprep.subr.mxu0 0.0
      %311 = vmatpush1.msra.mxu0 %v243
      %312 = vmatprep.subr.mxu0 0.0
      %313 = vmatpush1.msra.mxu0 %v244
      %314 = vmatprep.subr.mxu0 0.0
      %315 = vmatpush1.msra.mxu0 %v245
      %316 = vmatprep.subr.mxu0 0.0
      %317 = vmatpush1.msra.mxu0 %v246
      %318 = vmatprep.mubr.f32.mxu0 %v214
      %319 = vmatmul.mubr.f32.gmra.mrb[0].mxu0 %v213
      %v320 = vpop.f32.mrb[0].mxu0
      %v321 = vadd.f32 %v252, %v320
      %v322 = vpop.f32.mrb[0].mxu0
      %323 = vdwg.mxu0
      %v324 = vmax.f32 %v321, -2.0
      %v325 = vmin.f32 %v324, 2.0
      %v326 = vld [vmem:[%s208] sm:$0xff]
      %328 = vrot.lane.b32.xlu0 %v326, 2
      %v329 = vpop.permute.xlu0 %328
      %v331 = vsub.f32 %v326, %v329
      %332 = vrot.lane.b32.xlu0 %v326, 126
      %v333 = vpop.permute.xlu0 %332
      %v335 = vadd.f32 %v326, %v333
      %v336 = vmul.f32 %v335, 0.5
      %338 = vrot.lane.b32.xlu0 %v331, 126
      %v339 = vpop.permute.xlu0 %338
      %341 = vrot.lane.b32.xlu0 %v331, 2
      %v342 = vpop.permute.xlu0 %341
      %344 = vrot.lane.b32.xlu0 %v331, 4
      %v345 = vpop.permute.xlu0 %344
      %vm347 = vcmask 15360
      %v348 = vsel %vm347, %v339, %v331
      %vm349 = vcmask 31744
      %v350 = vsel %vm349, %v348, %v342
      %vm351 = vcmask 48128
      %v352 = vsel %vm351, %v350, %v345
      %354 = vrot.lane.b32.xlu0 %v336, 2
      %v355 = vpop.permute.xlu0 %354
      %357 = vrot.lane.b32.xlu0 %v336, 4
      %v358 = vpop.permute.xlu0 %357
      %360 = vrot.lane.b32.xlu0 %v336, 6
      %v361 = vpop.permute.xlu0 %360
      %v363 = vsel %vm347, %v336, %v355
      %v364 = vsel %vm349, %v363, %v358
      %v365 = vsel %vm351, %v364, %v361
      %v366 = vmul.f32 %v325, %v352
      %v367 = vadd.f32 %v365, %v366
      %vm368 = vcmask 64512
      %369 = vst.msk [vmem:[%s212] sm:$0xff] %vm368, %v367
      %p370 = scmp.lt.s32.totalorder %s15, 1
      %s371 = scalar_select %p370, %s15, 1
      %s372 = smul.addr %s371, 8
      %s373 = scalar_lea.vmem %s4, %s372
      // Predicated region
      $region37: #{tpu_custom_call.1} parent=35 // pred_check
        %p374 = pneg %p127
      $region38: #{tpu_custom_call.1} parent=35 // pred_check_branch
        %376 = sbr.rel (%p374) target = $region40
      $region39: #{tpu_custom_call.1} parent=35 // pred_region
        _
      $region40: #{tpu_custom_call.1} parent=35 // pred_fallthru
        _
    $region36: #{tpu_custom_call.1} parent=5 // pred_fallthru
      _
    %p377 = scmp.le.s32.totalorder 2, %s10
    // Predicated region
    $region41: #{tpu_custom_call.1} parent=5 // pred_check
      %p378 = pneg %p377
    $region42: #{tpu_custom_call.1} parent=5 // pred_check_branch
      %380 = sbr.rel (%p378) target = $region44
    $region43: #{tpu_custom_call.1} parent=5 // pred_region
      %s381 = ssub.s32 %s10, 2
      // Predicated region
      $region45: #{tpu_custom_call.1} parent=43 // pred_check
        %p382 = pneg %p133
      $region46: #{tpu_custom_call.1} parent=43 // pred_check_branch
        %384 = sbr.rel (%p382) target = $region48
      $region47: #{tpu_custom_call.1} parent=43 // pred_region
        %p385 = scmp.lt.s32.totalorder %s16, 1
        %s386 = scalar_select %p385, %s16, 1
        %s387 = smul.addr %s386, 8
        %s388 = scalar_lea.vmem %s4, %s387
      $region48: #{tpu_custom_call.1} parent=43 // pred_fallthru
        _
    $region44: #{tpu_custom_call.1} parent=5 // pred_fallthru
      _
  $region6: #{tpu_custom_call.1} parent=0 // loop_footer
    %s14 = sadd.s32 1, %s10
  $region7: #{tpu_custom_call.1} parent=0 // loop_footer_branch
    %9 = sbr.rel target = $region3
  $region8: #{tpu_custom_call.1} parent=0 // loop_exit
    _

</llo_original>
